<compile_context>
chip_gen: v6e
topology: v6e:2x2x1
jax: 0.10.0
libtpu: 0.0.40
codegen_flags: <defaults>
</compile_context>

<pallas_src>
import jax
import jax.numpy as jnp
from jax import lax
from jax.experimental import pallas as pl
from jax.experimental.pallas import tpu as pltpu

IN_EPS = 1e-3   # nn.InstanceNorm2d(eps=0.001)
BN_EPS = 1e-5   # nn.BatchNorm2d default eps


def _make_diff_pool_kernel(C, N, M_pad, use_bf16):
    def kernel(x_ref, scale_ref, shift_ref, w_ref, out_ref):
        x = x_ref[...]                                        # (C, N) f32

        # --- InstanceNorm2d (two-pass variance) + folded eval-mode BatchNorm2d
        #     fused into one FMA, then ReLU. All in f32 (v5e VPU has no bf16).
        mu = jnp.mean(x, axis=1, keepdims=True)               # (C, 1)
        xc = x - mu
        var = jnp.mean(xc * xc, axis=1, keepdims=True)        # (C, 1)
        inv = lax.rsqrt(var + IN_EPS) * scale_ref[...]        # (C, 1)
        h = jnp.maximum(xc * inv + shift_ref[...], 0.0)       # (C, N)

        # --- 1x1 conv as a per-batch MXU matmul: (M_pad, C) @ (C, N).
        #     Weight is the stationary operand, reused across grid steps.
        #     Conv bias intentionally dropped: softmax over N cancels it.
        w = w_ref[...]                                        # (M_pad, C)
        if use_bf16:
            embed = jnp.dot(w.astype(jnp.bfloat16), h.astype(jnp.bfloat16),
                            preferred_element_type=jnp.float32)
        else:
            embed = jnp.dot(w, h, preferred_element_type=jnp.float32)  # (M_pad, N)

        # --- Softmax over N (lane axis), reciprocal-multiply instead of divide.
        mx = jnp.max(embed, axis=1, keepdims=True)            # (M_pad, 1)
        e = jnp.exp(embed - mx)                               # (M_pad, N), f32 EUP
        denom = jnp.sum(e, axis=1, keepdims=True)             # (M_pad, 1)
        inv_denom = pl.reciprocal(denom, approx=use_bf16)     # exact in strict-f32 path
        s = e * inv_denom                                     # (M_pad, N) softmax

        # --- Pooling: out = x @ s^T without materializing the transpose
        #     (contract N, the last axis of both operands -- same pattern as
        #     the q·k^T flash-attention matmul, no XLU transpose needed).
        if use_bf16:
            pooled = lax.dot_general(
                x.astype(jnp.bfloat16), s.astype(jnp.bfloat16),
                (((1,), (1,)), ((), ())), preferred_element_type=jnp.float32)
        else:
            pooled = lax.dot_general(
                x, s, (((1,), (1,)), ((), ())), preferred_element_type=jnp.float32)

        # Full-block, lane-dense, 128-aligned store (M_pad % 128 == 0).
        out_ref[...] = pooled                                 # (C, M_pad)

    return kernel


def diff_pool_forward(x, params, *, use_bf16=True):
    """x: (B, C, N, 1) float32 -> (B, C, M, 1) float32."""
    B, C, N, _ = x.shape
    M = params["conv_w"].shape[0]
    M_pad = ((M + 127) // 128) * 128
    x3 = x[..., 0].astype(jnp.float32)                        # (B, C, N)

    # Fold eval-mode BatchNorm (gamma, beta, running stats) into scale/shift.
    scale = params["bn_gamma"] / jnp.sqrt(params["bn_rv"] + BN_EPS)     # (C,)
    shift = params["bn_beta"] - scale * params["bn_rm"]                 # (C,)
    scale = scale.reshape(C, 1).astype(jnp.float32)
    shift = shift.reshape(C, 1).astype(jnp.float32)

    # Zero-pad weight rows to M_pad; padded output-point columns are stripped
    # below so they never affect real outputs. Conv bias is dropped (softmax
    # over N is invariant to a per-(b, m) constant).
    w = params["conv_w"].astype(jnp.float32)                  # (M, C)
    if M_pad != M:
        w = jnp.pad(w, ((0, M_pad - M), (0, 0)))

    # Per-step VMEM budget: double-buffered x + out blocks, resident constants,
    # f32 intermediates (h, embed, e, s). Raise the scoped limit accordingly,
    # capped at v7x's 64 MiB physical VMEM per TensorCore.
    per_step_bytes = 4 * (
        2 * C * N            # x block, double-buffered
        + 2 * C * M_pad      # out block, double-buffered
        + M_pad * C + 2 * C  # conv weight + scale/shift (single copy)
        + 2 * C * N          # xc / h
        + 3 * M_pad * N      # embed / e / s
    )
    vmem_limit = int(min(max(per_step_bytes * 3 // 2, 32 * 1024 * 1024),
                         64 * 1024 * 1024))

    kernel = _make_diff_pool_kernel(C, N, M_pad, use_bf16)

    out = pl.pallas_call(
        kernel,
        out_shape=jax.ShapeDtypeStruct((B, C, M_pad), jnp.float32),
        grid_spec=pltpu.PrefetchScalarGridSpec(
            num_scalar_prefetch=0,
            grid=(B,),
            in_specs=[
                pl.BlockSpec((pl.Squeezed(), C, N), lambda b: (b, 0, 0)),  # x[b]
                pl.BlockSpec((C, 1), lambda b: (0, 0)),        # fused BN scale (const)
                pl.BlockSpec((C, 1), lambda b: (0, 0)),        # fused BN shift (const)
                pl.BlockSpec((M_pad, C), lambda b: (0, 0)),    # padded conv weight (const)
            ],
            out_specs=pl.BlockSpec((pl.Squeezed(), C, M_pad), lambda b: (b, 0, 0)),
        ),
        compiler_params=pltpu.CompilerParams(
            dimension_semantics=("parallel",),     # batches split across v7x cores
            vmem_limit_bytes=vmem_limit),
    )(x3, scale, shift, w)

    # Strip M padding and restore NCHW (W == 1). Layout plumbing only.
    return out[:, :, :M, None]                                # (B, C, M, 1)


def diff_pool_reference(x, params):
    """Pure-JAX reference of the PyTorch forward (eval-mode BN, with conv bias)."""
    x3 = x[..., 0]                                            # (B, C, N)
    mu = jnp.mean(x3, axis=2, keepdims=True)
    var = jnp.mean((x3 - mu) ** 2, axis=2, keepdims=True)
    h = (x3 - mu) / jnp.sqrt(var + IN_EPS)
    scale = params["bn_gamma"] / jnp.sqrt(params["bn_rv"] + BN_EPS)
    shift = params["bn_beta"] - scale * params["bn_rm"]
    h = h * scale[None, :, None] + shift[None, :, None]
    h = jnp.maximum(h, 0.0)
    embed = jnp.einsum("mc,bcn->bmn", params["conv_w"], h) + params["conv_b"][None, :, None]
    s = jax.nn.softmax(embed, axis=2)
    out = jnp.einsum("bcn,bmn->bcm", x3, s)
    return out[..., None]


if __name__ == "__main__":
    # Small shapes consistent with the module: x is NCHW with W == 1.
    B, C, N, M = 8, 32, 128, 32   # batch, in_channel, num points, output_points

    key = jax.random.PRNGKey(0)
    kx, kw, kb, kg, kbe, krm, krv = jax.random.split(key, 7)

    x = jax.random.normal(kx, (B, C, N, 1), dtype=jnp.float32)

    # Deterministic, synthetic parameters (shapes from __init__).
    params = {
        "conv_w": 0.1 * jax.random.normal(kw, (M, C), dtype=jnp.float32),   # Conv2d weight (M,C,1,1) squeezed
        "conv_b": 0.05 * jax.random.normal(kb, (M,), dtype=jnp.float32),
        "bn_gamma": 0.5 + jax.random.uniform(kg, (C,), dtype=jnp.float32),
        "bn_beta": 0.1 * jax.random.normal(kbe, (C,), dtype=jnp.float32),
        "bn_rm": 0.1 * jax.random.normal(krm, (C,), dtype=jnp.float32),
        "bn_rv": 0.5 + jax.random.uniform(krv, (C,), dtype=jnp.float32),
    }

    ref = diff_pool_reference(x, params)

    # Strict f32 MXU path: matches the pure-JAX / PyTorch reference tightly.
    out_f32 = jax.block_until_ready(diff_pool_forward(x, params, use_bf16=False))
    assert out_f32.shape == (B, C, M, 1), out_f32.shape
    assert jnp.allclose(out_f32, ref, atol=1e-4, rtol=1e-4), \
        float(jnp.max(jnp.abs(out_f32 - ref)))

    # Default fast path: bf16 MXU operands, f32 accumulation (v5e/v6e/v7x).
    out_bf16 = jax.block_until_ready(diff_pool_forward(x, params))
    assert out_bf16.shape == (B, C, M, 1), out_bf16.shape
    assert jnp.allclose(out_bf16, ref, atol=2e-2, rtol=2e-2), \
        float(jnp.max(jnp.abs(out_bf16 - ref)))

    print("KERNEL_OK")
</pallas_src>

<mosaic_0001>
module attributes {stable_mosaic.version = 11 : i64} {
  func.func @kernel(%arg0: i32, %arg1: memref<1x32x128xf32, #tpu.memory_space<vmem>>, %arg2: memref<32x1xf32, #tpu.memory_space<vmem>>, %arg3: memref<32x1xf32, #tpu.memory_space<vmem>>, %arg4: memref<128x32xf32, #tpu.memory_space<vmem>>, %arg5: memref<1x32x128xf32, #tpu.memory_space<vmem>>) attributes {dimension_semantics = [#tpu.dimension_semantics<parallel>], iteration_bounds = array<i64: 8>, scalar_prefetch = 0 : i64, scratch_operands = 0 : i64, tpu.core_type = #tpu.core_type<tc>, window_params = [{transform_indices = @transform_0, window_bounds = array<i64: 1, 32, 128>}, {pipeline_mode = #tpu.pipeline_mode<synchronous>, transform_indices = @transform_1, window_bounds = array<i64: 32, 1>}, {pipeline_mode = #tpu.pipeline_mode<synchronous>, transform_indices = @transform_2, window_bounds = array<i64: 32, 1>}, {pipeline_mode = #tpu.pipeline_mode<synchronous>, transform_indices = @transform_3, window_bounds = array<i64: 128, 32>}, {transform_indices = @transform_4, window_bounds = array<i64: 1, 32, 128>}]} {
    %c0 = arith.constant 0 : index
    %c0_0 = arith.constant 0 : index
    %c0_1 = arith.constant 0 : index
    %0 = vector.load %arg1[%c0, %c0_0, %c0_1] : memref<1x32x128xf32, #tpu.memory_space<vmem>>, vector<1x32x128xf32>
    %1 = vector.shape_cast %0 : vector<1x32x128xf32> to vector<32x128xf32>
    %cst = arith.constant dense<0.000000e+00> : vector<32xf32>
    %2 = vector.multi_reduction <add>, %1, %cst [1] : vector<32x128xf32> to vector<32xf32>
    %3 = vector.shape_cast %2 : vector<32xf32> to vector<32x1xf32>
    %cst_2 = arith.constant 1.280000e+02 : f32
    %4 = vector.broadcast %cst_2 : f32 to vector<32x1xf32>
    %5 = arith.divf %3, %4 : vector<32x1xf32>
    %6 = vector.broadcast %5 : vector<32x1xf32> to vector<32x128xf32>
    %7 = arith.subf %1, %6 : vector<32x128xf32>
    %8 = arith.mulf %7, %7 : vector<32x128xf32>
    %cst_3 = arith.constant dense<0.000000e+00> : vector<32xf32>
    %9 = vector.multi_reduction <add>, %8, %cst_3 [1] : vector<32x128xf32> to vector<32xf32>
    %10 = vector.shape_cast %9 : vector<32xf32> to vector<32x1xf32>
    %cst_4 = arith.constant 1.280000e+02 : f32
    %11 = vector.broadcast %cst_4 : f32 to vector<32x1xf32>
    %12 = arith.divf %10, %11 : vector<32x1xf32>
    %cst_5 = arith.constant 1.000000e-03 : f32
    %13 = vector.broadcast %cst_5 : f32 to vector<32x1xf32>
    %14 = arith.addf %12, %13 : vector<32x1xf32>
    %15 = math.rsqrt %14 : vector<32x1xf32>
    %c0_6 = arith.constant 0 : index
    %c0_7 = arith.constant 0 : index
    %16 = vector.load %arg2[%c0_6, %c0_7] : memref<32x1xf32, #tpu.memory_space<vmem>>, vector<32x1xf32>
    %17 = arith.mulf %15, %16 : vector<32x1xf32>
    %18 = vector.broadcast %17 : vector<32x1xf32> to vector<32x128xf32>
    %19 = arith.mulf %7, %18 : vector<32x128xf32>
    %c0_8 = arith.constant 0 : index
    %c0_9 = arith.constant 0 : index
    %20 = vector.load %arg3[%c0_8, %c0_9] : memref<32x1xf32, #tpu.memory_space<vmem>>, vector<32x1xf32>
    %21 = vector.broadcast %20 : vector<32x1xf32> to vector<32x128xf32>
    %22 = arith.addf %19, %21 : vector<32x128xf32>
    %cst_10 = arith.constant 0.000000e+00 : f32
    %23 = vector.broadcast %cst_10 : f32 to vector<32x128xf32>
    %24 = arith.maximumf %22, %23 : vector<32x128xf32>
    %c0_11 = arith.constant 0 : index
    %c0_12 = arith.constant 0 : index
    %25 = vector.load %arg4[%c0_11, %c0_12] : memref<128x32xf32, #tpu.memory_space<vmem>>, vector<128x32xf32>
    %cst_13 = arith.constant dense<0.000000e+00> : vector<128x128xf32>
    %26 = tpu.matmul %25, %24, %cst_13 {dimension_numbers = #tpu.dot_dimension_numbers<[1], [0], [0], [1], [0, 0, 1, 1], [], []>} : vector<128x32xf32>, vector<32x128xf32>, vector<128x128xf32> -> vector<128x128xf32>
    %cst_14 = arith.constant dense<0xFF800000> : vector<128xf32>
    %27 = vector.multi_reduction <maximumf>, %26, %cst_14 [1] : vector<128x128xf32> to vector<128xf32>
    %28 = vector.shape_cast %27 : vector<128xf32> to vector<128x1xf32>
    %29 = vector.broadcast %28 : vector<128x1xf32> to vector<128x128xf32>
    %30 = arith.subf %26, %29 : vector<128x128xf32>
    %31 = math.exp %30 : vector<128x128xf32>
    %cst_15 = arith.constant dense<0.000000e+00> : vector<128xf32>
    %32 = vector.multi_reduction <add>, %31, %cst_15 [1] : vector<128x128xf32> to vector<128xf32>
    %33 = vector.shape_cast %32 : vector<128xf32> to vector<128x1xf32>
    %34 = tpu.reciprocal %33 : vector<128x1xf32> -> vector<128x1xf32>
    %35 = vector.broadcast %34 : vector<128x1xf32> to vector<128x128xf32>
    %36 = arith.mulf %31, %35 : vector<128x128xf32>
    %cst_16 = arith.constant dense<0.000000e+00> : vector<32x128xf32>
    %37 = tpu.matmul %1, %36, %cst_16 {dimension_numbers = #tpu.dot_dimension_numbers<[1], [1], [0], [0], [0, 0, 1, 0], [], []>} : vector<32x128xf32>, vector<128x128xf32>, vector<32x128xf32> -> vector<32x128xf32>
    %c0_17 = arith.constant 0 : index
    %c0_18 = arith.constant 0 : index
    %c0_19 = arith.constant 0 : index
    %38 = vector.load %arg5[%c0_17, %c0_18, %c0_19] : memref<1x32x128xf32, #tpu.memory_space<vmem>>, vector<1x32x128xf32>
    %39 = vector.shape_cast %38 : vector<1x32x128xf32> to vector<32x128xf32>
    %40 = vector.shape_cast %37 : vector<32x128xf32> to vector<1x32x128xf32>
    tpu.vector_store %arg5[%c0_17, %c0_18, %c0_19], %40 {strides = array<i32>} : memref<1x32x128xf32, #tpu.memory_space<vmem>>, vector<1x32x128xf32>,
    return
  }
  func.func @transform_0(%arg0: i32) -> (i32, i32, i32) {
    %c0_i32 = arith.constant 0 : i32
    %c0_i32_0 = arith.constant 0 : i32
    %c0_i32_1 = arith.constant 0 : i32
    return %arg0, %c0_i32, %c0_i32_0 : i32, i32, i32
  }
  func.func @transform_1(%arg0: i32) -> (i32, i32) {
    %c0_i32 = arith.constant 0 : i32
    %c0_i32_0 = arith.constant 0 : i32
    %c0_i32_1 = arith.constant 0 : i32
    return %c0_i32, %c0_i32_0 : i32, i32
  }
  func.func @transform_2(%arg0: i32) -> (i32, i32) {
    %c0_i32 = arith.constant 0 : i32
    %c0_i32_0 = arith.constant 0 : i32
    %c0_i32_1 = arith.constant 0 : i32
    return %c0_i32, %c0_i32_0 : i32, i32
  }
  func.func @transform_3(%arg0: i32) -> (i32, i32) {
    %c0_i32 = arith.constant 0 : i32
    %c0_i32_0 = arith.constant 0 : i32
    %c0_i32_1 = arith.constant 0 : i32
    return %c0_i32, %c0_i32_0 : i32, i32
  }
  func.func @transform_4(%arg0: i32) -> (i32, i32, i32) {
    %c0_i32 = arith.constant 0 : i32
    %c0_i32_0 = arith.constant 0 : i32
    %c0_i32_1 = arith.constant 0 : i32
    return %arg0, %c0_i32, %c0_i32_0 : i32, i32, i32
  }
}

</mosaic_0001>

<llo_original>
// kernel: tpu_custom_call.1
$region0: #{tpu_custom_call.1}
  #allocation0 [shape = 'u32[]', space=smem, size = 0x4, offset = 0x4, fixed_abs, tag = 'smem constant byte address 0x4 - core index']
  #allocation1 [shape = 'u32[144,128]{1,0:T(1,128)}', space=vmem, size = 0x12000, scoped, tag = 'internal scratch']
  %s0 = inlined_call_operand.hbm [shape: f32[8,32,128], index: 0, kind: input, shape index: {}]
  %s1 = inlined_call_operand.vmem [shape: f32[32,1], index: 1, kind: input, shape index: {}]
  %s2 = inlined_call_operand.vmem [shape: f32[32,1], index: 2, kind: input, shape index: {}]
  %s3 = inlined_call_operand.vmem [shape: f32[128,32], index: 3, kind: input, shape index: {}]
  %s4 = inlined_call_operand.hbm [shape: f32[8,32,128], index: 4, kind: output, shape index: {}]
  %s5 = sld [smem:[#allocation0]]
  $region53: #{tpu_custom_call.1} parent=0
    _
  %s7 = ssub.s32 1, %s5
  %s8 = scalar_select 0, %s7, %s5
  $region1: #{tpu_custom_call.1} parent=0
    #allocation2 [shape = 'u8[32768]{0}', space=vmem, size = 0x8000, scoped, tag = 'input window, operand 0']
    #allocation3 [shape = 's32[2]{0}', space=sflag, size = 0x8, scoped, tag = 'scoped memory for tpu_custom_call.1']
    #allocation4 [shape = 's32[2]{0}', space=sflag, size = 0x8, scoped, tag = 'scoped memory for tpu_custom_call.1']
    #allocation5 [shape = 'u8[32768]{0}', space=vmem, size = 0x8000, scoped, tag = 'output window, operand 0']
    %9 = vsyncpa [#allocation3], 0
    %s10 = scalar_lea.sflag [#allocation3], 1
    %11 = vsyncpa %s10, 0
    %12 = vsyncpa [#allocation4], 0
    %s13 = scalar_lea.sflag [#allocation4], 1
    %14 = vsyncpa %s13, 0
    loop: start=0, step=1, limit=10
    $region2: #{tpu_custom_call.1} parent=1 // loop_pre_header
      _
    $region3: #{tpu_custom_call.1} parent=1 // loop_header
      %s16 = sphi 0, %s20
      %p17 = scmp.ge.s32.totalorder %s16, 10
      %s26 = sphi 0, %s28
      %s29 = sphi 0, %s26
      %s30 = sphi 0, %s29
      %s46 = sphi 0, %s30
      %s50 = sphi 0, %s50
      %s52 = sphi 0, %s50
      %s53 = sphi 0, %s52
      %s67 = sphi 0, %s53
      %s71 = sphi 0, %s71
      %s73 = sphi 0, %s71
      %s74 = sphi 0, %s73
      %s88 = sphi 0, %s74
      %s92 = sphi 0, %s92
      %s94 = sphi 0, %s92
      %s95 = sphi 0, %s94
      %s109 = sphi 0, %s95
      %s115 = sphi 0, %s117
      %s118 = sphi 0, %s115
      %s119 = sphi 0, %s118
      %s135 = sphi 0, %s119
    $region4: #{tpu_custom_call.1} parent=1 // loop_header_branch
      %19 = sbr.rel (%p17) target = $region8
    $region5: #{tpu_custom_call.1} parent=1 // loop_body
      %s21 = ssub.s32 %s16, 1
      %s22 = ssub.s32 %s16, 2
      %s23 = sadd.s32 %s16, 1
      %s24 = ssub.s32 %s16, %s23
      %p25 = scmp.eq.s32.totalorder %s24, 0
      %s27 = sadd.s32 %s26, 1
      %s28 = scalar_select %p25, %s26, %s27
      %p31 = pneg %p25
      %p32 = scmp.eq.s32.totalorder %s16, 7
      %p33 = por %p31, %p32
      %p34 = scmp.ne.s32.totalorder %s26, %s29
      %p35 = scmp.eq.s32.totalorder %s16, 0
      %p36 = por %p34, %p35
      %p37 = scmp.ne.s32.totalorder %s26, %s29
      %p38 = scmp.eq.s32.totalorder %s21, 7
      %p39 = por %p37, %p38
      %p40 = scmp.ne.s32.totalorder %s29, %s30
      %p41 = scmp.eq.s32.totalorder %s21, 0
      %p42 = por %p40, %p41
      %p43 = scmp.ne.s32.totalorder %s29, %s30
      %p44 = scmp.eq.s32.totalorder %s22, 7
      %p45 = por %p43, %p44
      %p47 = scmp.ne.s32.totalorder %s30, %s46
      %p48 = scmp.eq.s32.totalorder %s22, 0
      %p49 = por %p47, %p48
      %s51 = sadd.s32 %s50, 1
      %p54 = scmp.eq.s32.totalorder %s16, 7
      %p55 = scmp.ne.s32.totalorder %s50, %s52
      %p56 = scmp.eq.s32.totalorder %s16, 0
      %p57 = por %p55, %p56
      %p58 = scmp.ne.s32.totalorder %s50, %s52
      %p59 = scmp.eq.s32.totalorder %s21, 7
      %p60 = por %p58, %p59
      %p61 = scmp.ne.s32.totalorder %s52, %s53
      %p62 = scmp.eq.s32.totalorder %s21, 0
      %p63 = por %p61, %p62
      %p64 = scmp.ne.s32.totalorder %s52, %s53
      %p65 = scmp.eq.s32.totalorder %s22, 7
      %p66 = por %p64, %p65
      %p68 = scmp.ne.s32.totalorder %s53, %s67
      %p69 = scmp.eq.s32.totalorder %s22, 0
      %p70 = por %p68, %p69
      %s72 = sadd.s32 %s71, 1
      %p75 = scmp.eq.s32.totalorder %s16, 7
      %p76 = scmp.ne.s32.totalorder %s71, %s73
      %p77 = scmp.eq.s32.totalorder %s16, 0
      %p78 = por %p76, %p77
      %p79 = scmp.ne.s32.totalorder %s71, %s73
      %p80 = scmp.eq.s32.totalorder %s21, 7
      %p81 = por %p79, %p80
      %p82 = scmp.ne.s32.totalorder %s73, %s74
      %p83 = scmp.eq.s32.totalorder %s21, 0
      %p84 = por %p82, %p83
      %p85 = scmp.ne.s32.totalorder %s73, %s74
      %p86 = scmp.eq.s32.totalorder %s22, 7
      %p87 = por %p85, %p86
      %p89 = scmp.ne.s32.totalorder %s74, %s88
      %p90 = scmp.eq.s32.totalorder %s22, 0
      %p91 = por %p89, %p90
      %s93 = sadd.s32 %s92, 1
      %p96 = scmp.eq.s32.totalorder %s16, 7
      %p97 = scmp.ne.s32.totalorder %s92, %s94
      %p98 = scmp.eq.s32.totalorder %s16, 0
      %p99 = por %p97, %p98
      %p100 = scmp.ne.s32.totalorder %s92, %s94
      %p101 = scmp.eq.s32.totalorder %s21, 7
      %p102 = por %p100, %p101
      %p103 = scmp.ne.s32.totalorder %s94, %s95
      %p104 = scmp.eq.s32.totalorder %s21, 0
      %p105 = por %p103, %p104
      %p106 = scmp.ne.s32.totalorder %s94, %s95
      %p107 = scmp.eq.s32.totalorder %s22, 7
      %p108 = por %p106, %p107
      %p110 = scmp.ne.s32.totalorder %s95, %s109
      %p111 = scmp.eq.s32.totalorder %s22, 0
      %p112 = por %p110, %p111
      %s113 = ssub.s32 %s16, %s23
      %p114 = scmp.eq.s32.totalorder %s113, 0
      %s116 = sadd.s32 %s115, 1
      %s117 = scalar_select %p114, %s115, %s116
      %p120 = pneg %p114
      %p121 = scmp.eq.s32.totalorder %s16, 7
      %p122 = por %p120, %p121
      %p123 = scmp.ne.s32.totalorder %s115, %s118
      %p124 = scmp.eq.s32.totalorder %s16, 0
      %p125 = por %p123, %p124
      %p126 = scmp.ne.s32.totalorder %s115, %s118
      %p127 = scmp.eq.s32.totalorder %s21, 7
      %p128 = por %p126, %p127
      %p129 = scmp.ne.s32.totalorder %s118, %s119
      %p130 = scmp.eq.s32.totalorder %s21, 0
      %p131 = por %p129, %p130
      %p132 = scmp.ne.s32.totalorder %s118, %s119
      %p133 = scmp.eq.s32.totalorder %s22, 7
      %p134 = por %p132, %p133
      %p136 = scmp.ne.s32.totalorder %s119, %s135
      %p137 = scmp.eq.s32.totalorder %s22, 0
      %p138 = por %p136, %p137
      %p139 = scmp.le.s32.totalorder 1, %s16
      %p140 = scmp.lt.s32.totalorder %s16, 9
      %p141 = pnand %p139, %p140
      %p142 = pneg %p141
      // Predicated region
      $region9: #{tpu_custom_call.1} parent=5 // pred_check
        _
      $region10: #{tpu_custom_call.1} parent=5 // pred_check_branch
        %144 = sbr.rel (%p141) target = $region12
      $region11: #{tpu_custom_call.1} parent=5 // pred_region
        %s145 = ssub.s32 %s16, 1
        // Predicated region
        $region13: #{tpu_custom_call.1} parent=11 // pred_check
          %p146 = pneg %p63
        $region14: #{tpu_custom_call.1} parent=11 // pred_check_branch
          %148 = sbr.rel (%p146) target = $region16
        $region15: #{tpu_custom_call.1} parent=11 // pred_region
          _
        $region16: #{tpu_custom_call.1} parent=11 // pred_fallthru
          _
        // Predicated region
        $region17: #{tpu_custom_call.1} parent=11 // pred_check
          %p149 = pneg %p84
        $region18: #{tpu_custom_call.1} parent=11 // pred_check_branch
          %151 = sbr.rel (%p149) target = $region20
        $region19: #{tpu_custom_call.1} parent=11 // pred_region
          _
        $region20: #{tpu_custom_call.1} parent=11 // pred_fallthru
          _
        // Predicated region
        $region21: #{tpu_custom_call.1} parent=11 // pred_check
          %p152 = pneg %p105
        $region22: #{tpu_custom_call.1} parent=11 // pred_check_branch
          %154 = sbr.rel (%p152) target = $region24
        $region23: #{tpu_custom_call.1} parent=11 // pred_region
          _
        $region24: #{tpu_custom_call.1} parent=11 // pred_fallthru
          _
      $region12: #{tpu_custom_call.1} parent=5 // pred_fallthru
        _
      %p155 = scmp.lt.s32.totalorder %s16, 8
      // Predicated region
      $region25: #{tpu_custom_call.1} parent=5 // pred_check
        %p156 = pneg %p155
      $region26: #{tpu_custom_call.1} parent=5 // pred_check_branch
        %158 = sbr.rel (%p156) target = $region28
      $region27: #{tpu_custom_call.1} parent=5 // pred_region
        // Predicated region
        $region29: #{tpu_custom_call.1} parent=27 // pred_check
          %p159 = pneg %p36
        $region30: #{tpu_custom_call.1} parent=27 // pred_check_branch
          %161 = sbr.rel (%p159) target = $region32
        $region31: #{tpu_custom_call.1} parent=27 // pred_region
          %s162 = sand.u32 %s26, 1
          %s163 = scalar_lea.sflag [#allocation3], %s162
          %s164 = sand.u32 %s26, 1
          %s165 = smul.addr %s164, 32
          %s166 = scalar_lea.vmem [#allocation2], %s165
          %s168 = ssub.s32 512, 512
          %169 = vsyncadd %s163, %s168
          %s170 = smul.addr %s16, 4
          %s171 = smul.addr %s170, 128
          %s172 = scalar_lea.hbm %s0, %s171
          %s173 = sshll.u32 %s166, 4
          %s174 = int_to_ptr.vmem [resolvable:$true] %s173
          %179 = dma.hbm_to_vmem [thread:$0]  %s172, 512, %s174, %s163, 128, 128, 8
        $region32: #{tpu_custom_call.1} parent=27 // pred_fallthru
          _
      $region28: #{tpu_custom_call.1} parent=5 // pred_fallthru
        _
      %p180 = scmp.le.s32.totalorder 1, %s16
      %p181 = scmp.lt.s32.totalorder %s16, 9
      %p182 = pnand %p180, %p181
      %p183 = pneg %p182
      // Predicated region
      $region33: #{tpu_custom_call.1} parent=5 // pred_check
        _
      $region34: #{tpu_custom_call.1} parent=5 // pred_check_branch
        %185 = sbr.rel (%p182) target = $region36
      $region35: #{tpu_custom_call.1} parent=5 // pred_region
        %s186 = ssub.s32 %s16, 1
        %s187 = sand.u32 %s29, 1
        %s188 = scalar_lea.sflag [#allocation3], %s187
        %s189 = sand.u32 %s29, 1
        %s190 = smul.addr %s189, 32
        %s191 = scalar_lea.vmem [#allocation2], %s190
        // Predicated region
        $region37: #{tpu_custom_call.1} parent=35 // pred_check
          %p192 = pneg %p42
        $region38: #{tpu_custom_call.1} parent=35 // pred_check_branch
          %194 = sbr.rel (%p192) target = $region40
        $region39: #{tpu_custom_call.1} parent=35 // pred_region
          %195 = dma.done %s188, 512
        $region40: #{tpu_custom_call.1} parent=35 // pred_fallthru
          _
        %s196 = sand.u32 %s29, 1
        %s197 = scalar_lea.sflag [#allocation3], %s196
        %s198 = sand.u32 %s29, 1
        %s199 = smul.addr %s198, 32
        %s200 = scalar_lea.vmem [#allocation2], %s199
        %p201 = pneg %p42
        %p202 = pneg %p39
        %p203 = pneg %p63
        %p204 = pneg %p60
        %p205 = pneg %p84
        %p206 = pneg %p81
        %p207 = pneg %p105
        %p208 = pneg %p102
        %p209 = pneg %p131
        %p210 = pneg %p128
        %s211 = sand.u32 %s118, 1
        %s212 = scalar_lea.sflag [#allocation4], %s211
        %s213 = sand.u32 %s118, 1
        %s214 = smul.addr %s213, 32
        %s215 = scalar_lea.vmem [#allocation5], %s214
        %v216 = vld [vmem:[%s191] sm:$0xff]
        %v217 = vld [vmem:[%s191 + $0x8] sm:$0xff]
        %v218 = vld [vmem:[%s191 + $0x10] sm:$0xff]
        %v219 = vld [vmem:[%s191 + $0x18] sm:$0xff]
        %220 = vadd.xlane.f32.xlu0 %v216
        %v221 = vpop.xlane.xlu0 %220
        %222 = vadd.xlane.f32.xlu0 %v217
        %v223 = vpop.xlane.xlu0 %222
        %224 = vadd.xlane.f32.xlu0 %v218
        %v225 = vpop.xlane.xlu0 %224
        %226 = vadd.xlane.f32.xlu0 %v219
        %v227 = vpop.xlane.xlu0 %226
        %v228 = vrcp.pop 128.0
        %v229 = vmul.f32 %v221, %v228
        %v230 = vmul.f32 %v223, %v228
        %v231 = vmul.f32 %v225, %v228
        %v232 = vmul.f32 %v227, %v228
        %v233 = vsub.f32 %v216, %v229
        %v234 = vsub.f32 %v217, %v230
        %v235 = vsub.f32 %v218, %v231
        %v236 = vsub.f32 %v219, %v232
        %v237 = vmul.f32 %v233, %v233
        %v238 = vmul.f32 %v234, %v234
        %v239 = vmul.f32 %v235, %v235
        %v240 = vmul.f32 %v236, %v236
        %241 = vadd.xlane.f32.xlu0 %v237
        %v242 = vpop.xlane.xlu0 %241
        %243 = vadd.xlane.f32.xlu0 %v238
        %v244 = vpop.xlane.xlu0 %243
        %245 = vadd.xlane.f32.xlu0 %v239
        %v246 = vpop.xlane.xlu0 %245
        %247 = vadd.xlane.f32.xlu0 %v240
        %v248 = vpop.xlane.xlu0 %247
        %v249 = vmul.f32 %v242, %v228
        %v250 = vmul.f32 %v244, %v228
        %v251 = vmul.f32 %v246, %v228
        %v252 = vmul.f32 %v248, %v228
        %v253 = vadd.f32 %v249, 0.001
        %v254 = vadd.f32 %v250, 0.001
        %v255 = vadd.f32 %v251, 0.001
        %v256 = vadd.f32 %v252, 0.001
        %v257 = vrsqrt.pop %v253
        %v258 = vrsqrt.pop %v254
        %v259 = vrsqrt.pop %v255
        %v260 = vrsqrt.pop %v256
        %v261 = vld [vmem:[%s1] sm:$0xff]
        %v262 = vld [vmem:[%s1 + $0x8] sm:$0xff]
        %v263 = vld [vmem:[%s1 + $0x10] sm:$0xff]
        %v264 = vld [vmem:[%s1 + $0x18] sm:$0xff]
        %v265 = vmul.f32 %v257, %v261
        %v266 = vmul.f32 %v258, %v262
        %v267 = vmul.f32 %v259, %v263
        %v268 = vmul.f32 %v260, %v264
        %270 = vset.pattern.permute.xlu0 0
        %271 = vperm.xlu0 %270, %v265
        %v272 = vpop.permute.xlu0 %271
        %275 = vset.pattern.permute.xlu0 0
        %276 = vperm.xlu0 %275, %v266
        %v277 = vpop.permute.xlu0 %276
        %280 = vset.pattern.permute.xlu0 0
        %281 = vperm.xlu0 %280, %v267
        %v282 = vpop.permute.xlu0 %281
        %285 = vset.pattern.permute.xlu0 0
        %286 = vperm.xlu0 %285, %v268
        %v287 = vpop.permute.xlu0 %286
        %v289 = vmul.f32 %v233, %v272
        %v290 = vmul.f32 %v234, %v277
        %v291 = vmul.f32 %v235, %v282
        %v292 = vmul.f32 %v236, %v287
        %v293 = vld [vmem:[%s2] sm:$0xff]
        %v294 = vld [vmem:[%s2 + $0x8] sm:$0xff]
        %v295 = vld [vmem:[%s2 + $0x10] sm:$0xff]
        %v296 = vld [vmem:[%s2 + $0x18] sm:$0xff]
        %298 = vset.pattern.permute.xlu0 0
        %299 = vperm.xlu0 %298, %v293
        %v300 = vpop.permute.xlu0 %299
        %303 = vset.pattern.permute.xlu0 0
        %304 = vperm.xlu0 %303, %v294
        %v305 = vpop.permute.xlu0 %304
        %308 = vset.pattern.permute.xlu0 0
        %309 = vperm.xlu0 %308, %v295
        %v310 = vpop.permute.xlu0 %309
        %313 = vset.pattern.permute.xlu0 0
        %314 = vperm.xlu0 %313, %v296
        %v315 = vpop.permute.xlu0 %314
        %v317 = vadd.f32 %v289, %v300
        %v318 = vadd.f32 %v290, %v305
        %v319 = vadd.f32 %v291, %v310
        %v320 = vadd.f32 %v292, %v315
        %v321 = vmax.f32 %v317, 0.0
        %v322 = vmax.f32 %v318, 0.0
        %v323 = vmax.f32 %v319, 0.0
        %v324 = vmax.f32 %v320, 0.0
        %v325 = vld [vmem:[%s3] sm:$0xff]
        %v326 = vld [vmem:[%s3 + $0x8] sm:$0xff]
        %v327 = vld [vmem:[%s3 + $0x10] sm:$0xff]
        %v328 = vld [vmem:[%s3 + $0x18] sm:$0xff]
        %v329 = vld [vmem:[%s3 + $0x20] sm:$0xff]
        %v330 = vld [vmem:[%s3 + $0x28] sm:$0xff]
        %v331 = vld [vmem:[%s3 + $0x30] sm:$0xff]
        %v332 = vld [vmem:[%s3 + $0x38] sm:$0xff]
        %v333 = vld [vmem:[%s3 + $0x40] sm:$0xff]
        %v334 = vld [vmem:[%s3 + $0x48] sm:$0xff]
        %v335 = vld [vmem:[%s3 + $0x50] sm:$0xff]
        %v336 = vld [vmem:[%s3 + $0x58] sm:$0xff]
        %v337 = vld [vmem:[%s3 + $0x60] sm:$0xff]
        %v338 = vld [vmem:[%s3 + $0x68] sm:$0xff]
        %v339 = vld [vmem:[%s3 + $0x70] sm:$0xff]
        %v340 = vld [vmem:[%s3 + $0x78] sm:$0xff]
        %vm341 = vcmask 261120
        %v343 = vsel %vm341, %v325, 0
        %v346 = vsel %vm341, %v326, 0
        %v349 = vsel %vm341, %v327, 0
        %v352 = vsel %vm341, %v328, 0
        %v355 = vsel %vm341, %v329, 0
        %v358 = vsel %vm341, %v330, 0
        %v361 = vsel %vm341, %v331, 0
        %v364 = vsel %vm341, %v332, 0
        %v367 = vsel %vm341, %v333, 0
        %v370 = vsel %vm341, %v334, 0
        %v373 = vsel %vm341, %v335, 0
        %v376 = vsel %vm341, %v336, 0
        %v379 = vsel %vm341, %v337, 0
        %v382 = vsel %vm341, %v338, 0
        %v385 = vsel %vm341, %v339, 0
        %v388 = vsel %vm341, %v340, 0
        %390 = vmatprep.subr.mxu0 0.0
        %391 = vmatpush1.msra.mxu0 0.0
        %392 = vmatprep.subr.mxu0 0.0
        %393 = vmatpush1.msra.mxu0 0.0
        %394 = vmatprep.subr.mxu0 0.0
        %395 = vmatpush1.msra.mxu0 0.0
        %396 = vmatprep.subr.mxu0 0.0
        %397 = vmatpush1.msra.mxu0 0.0
        %398 = vmatprep.subr.mxu0 0.0
        %399 = vmatpush1.msra.mxu0 0.0
        %400 = vmatprep.subr.mxu0 0.0
        %401 = vmatpush1.msra.mxu0 0.0
        %402 = vmatprep.subr.mxu0 0.0
        %403 = vmatpush1.msra.mxu0 0.0
        %404 = vmatprep.subr.mxu0 0.0
        %405 = vmatpush1.msra.mxu0 0.0
        %406 = vmatprep.subr.mxu0 0.0
        %407 = vmatpush1.msra.mxu0 0.0
        %408 = vmatprep.subr.mxu0 0.0
        %409 = vmatpush1.msra.mxu0 0.0
        %410 = vmatprep.subr.mxu0 0.0
        %411 = vmatpush1.msra.mxu0 0.0
        %412 = vmatprep.subr.mxu0 0.0
        %413 = vmatpush1.msra.mxu0 0.0
        %414 = vmatprep.subr.mxu0 0.0
        %415 = vmatpush1.msra.mxu0 %v324
        %416 = vmatprep.subr.mxu0 0.0
        %417 = vmatpush1.msra.mxu0 %v323
        %418 = vmatprep.subr.mxu0 0.0
        %419 = vmatpush1.msra.mxu0 %v322
        %420 = vmatprep.subr.mxu0 0.0
        %421 = vmatpush1.msra.mxu0 %v321
        %422 = vmatprep.subr.mxu0 0.0
        %423 = vmatpush2.msra.mxu0 0.0
        %424 = vmatprep.subr.mxu0 0.0
        %425 = vmatpush2.msra.mxu0 0.0
        %426 = vmatprep.subr.mxu0 0.0
        %427 = vmatpush2.msra.mxu0 0.0
        %428 = vmatprep.subr.mxu0 0.0
        %429 = vmatpush2.msra.mxu0 0.0
        %430 = vmatprep.subr.mxu0 0.0
        %431 = vmatpush2.msra.mxu0 0.0
        %432 = vmatprep.subr.mxu0 0.0
        %433 = vmatpush2.msra.mxu0 0.0
        %434 = vmatprep.subr.mxu0 0.0
        %435 = vmatpush2.msra.mxu0 0.0
        %436 = vmatprep.subr.mxu0 0.0
        %437 = vmatpush2.msra.mxu0 0.0
        %438 = vmatprep.subr.mxu0 0.0
        %439 = vmatpush2.msra.mxu0 0.0
        %440 = vmatprep.subr.mxu0 0.0
        %441 = vmatpush2.msra.mxu0 0.0
        %442 = vmatprep.subr.mxu0 0.0
        %443 = vmatpush2.msra.mxu0 0.0
        %444 = vmatprep.subr.mxu0 0.0
        %445 = vmatpush2.msra.mxu0 0.0
        %446 = vmatprep.subr.mxu0 0.0
        %447 = vmatpush2.msra.mxu0 0.0
        %448 = vmatprep.subr.mxu0 0.0
        %449 = vmatpush2.msra.mxu0 0.0
        %450 = vmatprep.subr.mxu0 0.0
        %451 = vmatpush2.msra.mxu0 0.0
        %452 = vmatprep.subr.mxu0 0.0
        %453 = vmatpush2.msra.mxu0 0.0
        %454 = vmatprep.mubr.f32.mxu0 0.0
        %455 = vmatmul.mubr.f32.gmra.mxu0 %v343
        %v456 = vpop.f32.mrf.mxu0
        %v457 = vadd.f32 0.0, %v456
        %v458 = vpop.f32.mrf.mxu0
        %459 = vmatprep.mubr.f32.mxu0 0.0
        %460 = vmatmul.mubr.f32.gmra.mxu0 %v346
        %v461 = vpop.f32.mrf.mxu0
        %v462 = vadd.f32 0.0, %v461
        %v463 = vpop.f32.mrf.mxu0
        %464 = vmatprep.mubr.f32.mxu0 0.0
        %465 = vmatmul.mubr.f32.gmra.mxu0 %v349
        %v466 = vpop.f32.mrf.mxu0
        %v467 = vadd.f32 0.0, %v466
        %v468 = vpop.f32.mrf.mxu0
        %469 = vmatprep.mubr.f32.mxu0 0.0
        %470 = vmatmul.mubr.f32.gmra.mxu0 %v352
        %v471 = vpop.f32.mrf.mxu0
        %v472 = vadd.f32 0.0, %v471
        %v473 = vpop.f32.mrf.mxu0
        %474 = vmatprep.mubr.f32.mxu0 0.0
        %475 = vmatmul.mubr.f32.gmra.mxu0 %v355
        %v476 = vpop.f32.mrf.mxu0
        %v477 = vadd.f32 0.0, %v476
        %v478 = vpop.f32.mrf.mxu0
        %479 = vmatprep.mubr.f32.mxu0 0.0
        %480 = vmatmul.mubr.f32.gmra.mxu0 %v358
        %v481 = vpop.f32.mrf.mxu0
        %v482 = vadd.f32 0.0, %v481
        %v483 = vpop.f32.mrf.mxu0
        %484 = vmatprep.mubr.f32.mxu0 0.0
        %485 = vmatmul.mubr.f32.gmra.mxu0 %v361
        %v486 = vpop.f32.mrf.mxu0
        %v487 = vadd.f32 0.0, %v486
        %v488 = vpop.f32.mrf.mxu0
        %489 = vmatprep.mubr.f32.mxu0 0.0
        %490 = vmatmul.mubr.f32.gmra.mxu0 %v364
        %v491 = vpop.f32.mrf.mxu0
        %v492 = vadd.f32 0.0, %v491
        %v493 = vpop.f32.mrf.mxu0
        %494 = vmatprep.mubr.f32.mxu0 0.0
        %495 = vmatmul.mubr.f32.gmra.mxu0 %v367
        %v496 = vpop.f32.mrf.mxu0
        %v497 = vadd.f32 0.0, %v496
        %v498 = vpop.f32.mrf.mxu0
        %499 = vmatprep.mubr.f32.mxu0 0.0
        %500 = vmatmul.mubr.f32.gmra.mxu0 %v370
        %v501 = vpop.f32.mrf.mxu0
        %v502 = vadd.f32 0.0, %v501
        %v503 = vpop.f32.mrf.mxu0
        %504 = vmatprep.mubr.f32.mxu0 0.0
        %505 = vmatmul.mubr.f32.gmra.mxu0 %v373
        %v506 = vpop.f32.mrf.mxu0
        %v507 = vadd.f32 0.0, %v506
        %v508 = vpop.f32.mrf.mxu0
        %509 = vmatprep.mubr.f32.mxu0 0.0
        %510 = vmatmul.mubr.f32.gmra.mxu0 %v376
        %v511 = vpop.f32.mrf.mxu0
        %v512 = vadd.f32 0.0, %v511
        %v513 = vpop.f32.mrf.mxu0
        %514 = vmatprep.mubr.f32.mxu0 0.0
        %515 = vmatmul.mubr.f32.gmra.mxu0 %v379
        %v516 = vpop.f32.mrf.mxu0
        %v517 = vadd.f32 0.0, %v516
        %v518 = vpop.f32.mrf.mxu0
        %519 = vmatprep.mubr.f32.mxu0 0.0
        %520 = vmatmul.mubr.f32.gmra.mxu0 %v382
        %v521 = vpop.f32.mrf.mxu0
        %v522 = vadd.f32 0.0, %v521
        %v523 = vpop.f32.mrf.mxu0
        %524 = vmatprep.mubr.f32.mxu0 0.0
        %525 = vmatmul.mubr.f32.gmra.mxu0 %v385
        %v526 = vpop.f32.mrf.mxu0
        %v527 = vadd.f32 0.0, %v526
        %v528 = vpop.f32.mrf.mxu0
        %529 = vmatprep.mubr.f32.mxu0 0.0
        %530 = vmatmul.mubr.f32.gmra.mxu0 %v388
        %v531 = vpop.f32.mrf.mxu0
        %v532 = vadd.f32 0.0, %v531
        %v533 = vpop.f32.mrf.mxu0
        %534 = vdwg.mxu0
        %535 = vmax.xlane.f32.xlu0 %v457
        %v536 = vpop.xlane.xlu0 %535
        %537 = vmax.xlane.f32.xlu0 %v462
        %v538 = vpop.xlane.xlu0 %537
        %539 = vmax.xlane.f32.xlu0 %v467
        %v540 = vpop.xlane.xlu0 %539
        %541 = vmax.xlane.f32.xlu0 %v472
        %v542 = vpop.xlane.xlu0 %541
        %543 = vmax.xlane.f32.xlu0 %v477
        %v544 = vpop.xlane.xlu0 %543
        %545 = vmax.xlane.f32.xlu0 %v482
        %v546 = vpop.xlane.xlu0 %545
        %547 = vmax.xlane.f32.xlu0 %v487
        %v548 = vpop.xlane.xlu0 %547
        %549 = vmax.xlane.f32.xlu0 %v492
        %v550 = vpop.xlane.xlu0 %549
        %551 = vmax.xlane.f32.xlu0 %v497
        %v552 = vpop.xlane.xlu0 %551
        %553 = vmax.xlane.f32.xlu0 %v502
        %v554 = vpop.xlane.xlu0 %553
        %555 = vmax.xlane.f32.xlu0 %v507
        %v556 = vpop.xlane.xlu0 %555
        %557 = vmax.xlane.f32.xlu0 %v512
        %v558 = vpop.xlane.xlu0 %557
        %559 = vmax.xlane.f32.xlu0 %v517
        %v560 = vpop.xlane.xlu0 %559
        %561 = vmax.xlane.f32.xlu0 %v522
        %v562 = vpop.xlane.xlu0 %561
        %563 = vmax.xlane.f32.xlu0 %v527
        %v564 = vpop.xlane.xlu0 %563
        %565 = vmax.xlane.f32.xlu0 %v532
        %v566 = vpop.xlane.xlu0 %565
        %v567 = vsub.f32 %v457, %v536
        %v568 = vsub.f32 %v462, %v538
        %v569 = vsub.f32 %v467, %v540
        %v570 = vsub.f32 %v472, %v542
        %v571 = vsub.f32 %v477, %v544
        %v572 = vsub.f32 %v482, %v546
        %v573 = vsub.f32 %v487, %v548
        %v574 = vsub.f32 %v492, %v550
        %v575 = vsub.f32 %v497, %v552
        %v576 = vsub.f32 %v502, %v554
        %v577 = vsub.f32 %v507, %v556
        %v578 = vsub.f32 %v512, %v558
        %v579 = vsub.f32 %v517, %v560
        %v580 = vsub.f32 %v522, %v562
        %v581 = vsub.f32 %v527, %v564
        %v582 = vsub.f32 %v532, %v566
        %v583 = vmul.f32 %v567, 1.442695
        %v584 = vpow.pop %v583
        %v585 = vmul.f32 %v568, 1.442695
        %v586 = vpow.pop %v585
        %v587 = vmul.f32 %v569, 1.442695
        %v588 = vpow.pop %v587
        %v589 = vmul.f32 %v570, 1.442695
        %v590 = vpow.pop %v589
        %v591 = vmul.f32 %v571, 1.442695
        %v592 = vpow.pop %v591
        %v593 = vmul.f32 %v572, 1.442695
        %v594 = vpow.pop %v593
        %v595 = vmul.f32 %v573, 1.442695
        %v596 = vpow.pop %v595
        %v597 = vmul.f32 %v574, 1.442695
        %v598 = vpow.pop %v597
        %v599 = vmul.f32 %v575, 1.442695
        %v600 = vpow.pop %v599
        %v601 = vmul.f32 %v576, 1.442695
        %v602 = vpow.pop %v601
        %v603 = vmul.f32 %v577, 1.442695
        %v604 = vpow.pop %v603
        %v605 = vmul.f32 %v578, 1.442695
        %v606 = vpow.pop %v605
        %v607 = vmul.f32 %v579, 1.442695
        %v608 = vpow.pop %v607
        %v609 = vmul.f32 %v580, 1.442695
        %v610 = vpow.pop %v609
        %v611 = vmul.f32 %v581, 1.442695
        %v612 = vpow.pop %v611
        %v613 = vmul.f32 %v582, 1.442695
        %v614 = vpow.pop %v613
        %615 = vadd.xlane.f32.xlu0 %v584
        %v616 = vpop.xlane.xlu0 %615
        %617 = vadd.xlane.f32.xlu0 %v586
        %v618 = vpop.xlane.xlu0 %617
        %619 = vadd.xlane.f32.xlu0 %v588
        %v620 = vpop.xlane.xlu0 %619
        %621 = vadd.xlane.f32.xlu0 %v590
        %v622 = vpop.xlane.xlu0 %621
        %623 = vadd.xlane.f32.xlu0 %v592
        %v624 = vpop.xlane.xlu0 %623
        %625 = vadd.xlane.f32.xlu0 %v594
        %v626 = vpop.xlane.xlu0 %625
        %627 = vadd.xlane.f32.xlu0 %v596
        %v628 = vpop.xlane.xlu0 %627
        %629 = vadd.xlane.f32.xlu0 %v598
        %v630 = vpop.xlane.xlu0 %629
        %631 = vadd.xlane.f32.xlu0 %v600
        %v632 = vpop.xlane.xlu0 %631
        %633 = vadd.xlane.f32.xlu0 %v602
        %v634 = vpop.xlane.xlu0 %633
        %635 = vadd.xlane.f32.xlu0 %v604
        %v636 = vpop.xlane.xlu0 %635
        %637 = vadd.xlane.f32.xlu0 %v606
        %v638 = vpop.xlane.xlu0 %637
        %639 = vadd.xlane.f32.xlu0 %v608
        %v640 = vpop.xlane.xlu0 %639
        %641 = vadd.xlane.f32.xlu0 %v610
        %v642 = vpop.xlane.xlu0 %641
        %643 = vadd.xlane.f32.xlu0 %v612
        %v644 = vpop.xlane.xlu0 %643
        %645 = vadd.xlane.f32.xlu0 %v614
        %v646 = vpop.xlane.xlu0 %645
        %v647 = vrcp.pop %v616
        %v648 = vrcp.pop %v618
        %v649 = vrcp.pop %v620
        %v650 = vrcp.pop %v622
        %v651 = vrcp.pop %v624
        %v652 = vrcp.pop %v626
        %v653 = vrcp.pop %v628
        %v654 = vrcp.pop %v630
        %v655 = vrcp.pop %v632
        %v656 = vrcp.pop %v634
        %v657 = vrcp.pop %v636
        %v658 = vrcp.pop %v638
        %v659 = vrcp.pop %v640
        %v660 = vrcp.pop %v642
        %v661 = vrcp.pop %v644
        %v662 = vrcp.pop %v646
        %v663 = vmul.f32 %v584, %v647
        %v664 = vmul.f32 %v586, %v648
        %v665 = vmul.f32 %v588, %v649
        %v666 = vmul.f32 %v590, %v650
        %v667 = vmul.f32 %v592, %v651
        %v668 = vmul.f32 %v594, %v652
        %v669 = vmul.f32 %v596, %v653
        %v670 = vmul.f32 %v598, %v654
        %v671 = vmul.f32 %v600, %v655
        %v672 = vmul.f32 %v602, %v656
        %v673 = vmul.f32 %v604, %v657
        %v674 = vmul.f32 %v606, %v658
        %v675 = vmul.f32 %v608, %v659
        %v676 = vmul.f32 %v610, %v660
        %v677 = vmul.f32 %v612, %v661
        %v678 = vmul.f32 %v614, %v662
        %679 = vmatprep.subr.mxu0 0.0
        %680 = vmatpush1.xpose.msra.mxu0 %v678
        %681 = vmatprep.subr.mxu0 0.0
        %682 = vmatpush1.xpose.msra.mxu0 %v677
        %683 = vmatprep.subr.mxu0 0.0
        %684 = vmatpush1.xpose.msra.mxu0 %v676
        %685 = vmatprep.subr.mxu0 0.0
        %686 = vmatpush1.xpose.msra.mxu0 %v675
        %687 = vmatprep.subr.mxu0 0.0
        %688 = vmatpush1.xpose.msra.mxu0 %v674
        %689 = vmatprep.subr.mxu0 0.0
        %690 = vmatpush1.xpose.msra.mxu0 %v673
        %691 = vmatprep.subr.mxu0 0.0
        %692 = vmatpush1.xpose.msra.mxu0 %v672
        %693 = vmatprep.subr.mxu0 0.0
        %694 = vmatpush1.xpose.msra.mxu0 %v671
        %695 = vmatprep.subr.mxu0 0.0
        %696 = vmatpush1.xpose.msra.mxu0 %v670
        %697 = vmatprep.subr.mxu0 0.0
        %698 = vmatpush1.xpose.msra.mxu0 %v669
        %699 = vmatprep.subr.mxu0 0.0
        %700 = vmatpush1.xpose.msra.mxu0 %v668
        %701 = vmatprep.subr.mxu0 0.0
        %702 = vmatpush1.xpose.msra.mxu0 %v667
        %703 = vmatprep.subr.mxu0 0.0
        %704 = vmatpush1.xpose.msra.mxu0 %v666
        %705 = vmatprep.subr.mxu0 0.0
        %706 = vmatpush1.xpose.msra.mxu0 %v665
        %707 = vmatprep.subr.mxu0 0.0
        %708 = vmatpush1.xpose.msra.mxu0 %v664
        %709 = vmatprep.subr.mxu0 0.0
        %710 = vmatpush1.xpose.msra.mxu0 %v663
        %711 = vmatprep.subr.mxu0 0.0
        %712 = vmatpush2.xpose.msra.mxu0 0.0
        %713 = vmatprep.subr.mxu0 0.0
        %714 = vmatpush2.xpose.msra.mxu0 0.0
        %715 = vmatprep.subr.mxu0 0.0
        %716 = vmatpush2.xpose.msra.mxu0 0.0
        %717 = vmatprep.subr.mxu0 0.0
        %718 = vmatpush2.xpose.msra.mxu0 0.0
        %719 = vmatprep.subr.mxu0 0.0
        %720 = vmatpush2.xpose.msra.mxu0 0.0
        %721 = vmatprep.subr.mxu0 0.0
        %722 = vmatpush2.xpose.msra.mxu0 0.0
        %723 = vmatprep.subr.mxu0 0.0
        %724 = vmatpush2.xpose.msra.mxu0 0.0
        %725 = vmatprep.subr.mxu0 0.0
        %726 = vmatpush2.xpose.msra.mxu0 0.0
        %727 = vmatprep.subr.mxu0 0.0
        %728 = vmatpush2.xpose.msra.mxu0 0.0
        %729 = vmatprep.subr.mxu0 0.0
        %730 = vmatpush2.xpose.msra.mxu0 0.0
        %731 = vmatprep.subr.mxu0 0.0
        %732 = vmatpush2.xpose.msra.mxu0 0.0
        %733 = vmatprep.subr.mxu0 0.0
        %734 = vmatpush2.xpose.msra.mxu0 0.0
        %735 = vmatprep.subr.mxu0 0.0
        %736 = vmatpush2.xpose.msra.mxu0 0.0
        %737 = vmatprep.subr.mxu0 0.0
        %738 = vmatpush2.xpose.msra.mxu0 0.0
        %739 = vmatprep.subr.mxu0 0.0
        %740 = vmatpush2.xpose.msra.mxu0 0.0
        %741 = vmatprep.subr.mxu0 0.0
        %742 = vmatpush2.xpose.msra.mxu0 0.0
        %743 = vmatprep.mubr.f32.mxu0 0.0
        %744 = vmatmul.mubr.f32.gmra.mxu0 %v216
        %v745 = vpop.f32.mrf.mxu0
        %v746 = vadd.f32 0.0, %v745
        %v747 = vpop.f32.mrf.mxu0
        %748 = vmatprep.mubr.f32.mxu0 0.0
        %749 = vmatmul.mubr.f32.gmra.mxu0 %v217
        %v750 = vpop.f32.mrf.mxu0
        %v751 = vadd.f32 0.0, %v750
        %v752 = vpop.f32.mrf.mxu0
        %753 = vmatprep.mubr.f32.mxu0 0.0
        %754 = vmatmul.mubr.f32.gmra.mxu0 %v218
        %v755 = vpop.f32.mrf.mxu0
        %v756 = vadd.f32 0.0, %v755
        %v757 = vpop.f32.mrf.mxu0
        %758 = vmatprep.mubr.f32.mxu0 0.0
        %759 = vmatmul.mubr.f32.gmra.mxu0 %v219
        %v760 = vpop.f32.mrf.mxu0
        %v761 = vadd.f32 0.0, %v760
        %v762 = vpop.f32.mrf.mxu0
        %763 = vdwg.mxu0
        %764 = vst [vmem:[%s215] sm:$0xff] %v746
        %765 = vst [vmem:[%s215 + $0x8] sm:$0xff] %v751
        %766 = vst [vmem:[%s215 + $0x10] sm:$0xff] %v756
        %767 = vst [vmem:[%s215 + $0x18] sm:$0xff] %v761
        %s768 = sand.u32 %s118, 1
        %s769 = scalar_lea.sflag [#allocation4], %s768
        %s770 = sand.u32 %s118, 1
        %s771 = smul.addr %s770, 32
        %s772 = scalar_lea.vmem [#allocation5], %s771
        // Predicated region
        $region41: #{tpu_custom_call.1} parent=35 // pred_check
          %p773 = pneg %p128
        $region42: #{tpu_custom_call.1} parent=35 // pred_check_branch
          %775 = sbr.rel (%p773) target = $region44
        $region43: #{tpu_custom_call.1} parent=35 // pred_region
          %s777 = ssub.s32 512, 512
          %778 = vsyncadd %s769, %s777
          %s779 = smul.addr %s21, 4
          %s780 = smul.addr %s779, 128
          %s781 = scalar_lea.hbm %s4, %s780
          %s782 = sshll.u32 %s772, 4
          %s783 = int_to_ptr.vmem [resolvable:$true] %s782
          %788 = dma.vmem_to_hbm [thread:$0]  %s783, 512, %s781, %s769, 128, 128, 8
        $region44: #{tpu_custom_call.1} parent=35 // pred_fallthru
          _
      $region36: #{tpu_custom_call.1} parent=5 // pred_fallthru
        _
      %p789 = scmp.le.s32.totalorder 2, %s16
      // Predicated region
      $region45: #{tpu_custom_call.1} parent=5 // pred_check
        %p790 = pneg %p789
      $region46: #{tpu_custom_call.1} parent=5 // pred_check_branch
        %792 = sbr.rel (%p790) target = $region48
      $region47: #{tpu_custom_call.1} parent=5 // pred_region
        %s793 = ssub.s32 %s16, 2
        // Predicated region
        $region49: #{tpu_custom_call.1} parent=47 // pred_check
          %p794 = pneg %p134
        $region50: #{tpu_custom_call.1} parent=47 // pred_check_branch
          %796 = sbr.rel (%p794) target = $region52
        $region51: #{tpu_custom_call.1} parent=47 // pred_region
          %s797 = sand.u32 %s119, 1
          %s798 = scalar_lea.sflag [#allocation4], %s797
          %s799 = sand.u32 %s119, 1
          %s800 = smul.addr %s799, 32
          %s801 = scalar_lea.vmem [#allocation5], %s800
          %802 = dma.done %s798, 512
        $region52: #{tpu_custom_call.1} parent=47 // pred_fallthru
          _
      $region48: #{tpu_custom_call.1} parent=5 // pred_fallthru
        _
    $region6: #{tpu_custom_call.1} parent=1 // loop_footer
      %s20 = sadd.s32 1, %s16
    $region7: #{tpu_custom_call.1} parent=1 // loop_footer_branch
      %15 = sbr.rel target = $region3
    $region8: #{tpu_custom_call.1} parent=1 // loop_exit
      _
    %803 = vsyncpa [#allocation3], 1
    %s804 = scalar_lea.sflag [#allocation3], 1
    %805 = vsyncpa %s804, 1
    %806 = vsyncpa [#allocation4], 1
    %s807 = scalar_lea.sflag [#allocation4], 1
    %808 = vsyncpa %s807, 1

</llo_original>
